<compile_context>
chip_gen: v7x
topology: tpu7x:2x2x1
jax: 0.10.0
libtpu: 0.0.40
codegen_flags: <defaults>
</compile_context>

<pallas_src>
import numpy as np
import jax
import jax.numpy as jnp
from jax import lax
from jax.experimental import pallas as pl
from jax.experimental.pallas import tpu as pltpu

_EPSILON = 1e-07
_TRIGGER_SIZE = 80  # hard-coded "80" in the PyTorch forward


def _blend_kernel(x_ref, ab_ref, o_ref):
    # x_ref / o_ref: (C, tH, tW)   one batch image's band tile (batch squeezed)
    # ab_ref:        (C+1, tH, tW) plane 0 = a = 1-mask, planes 1..C = mask*pattern
    a = ab_ref[0:1, :, :]          # (1, tH, tW) -- broadcasts over channels
    b = ab_ref[1:, :, :]           # (C, tH, tW)
    o_ref[...] = (a * x_ref[...] + b).astype(o_ref.dtype)


def _ceil_to(v, m):
    return -(-v // m) * m


def _pick_window(pos, total, align, prefer_multi):
    """Choose (tile, blk0, n_blocks): blocks of size `tile` (multiple of
    `align`) whose union covers [pos, min(total, pos+80)) and lies fully
    inside [0, total).

    Scoring: (need >=2 blocks if prefer_multi) -> fewest blocks (largest tile,
    step-overhead bound at these shapes) -> fewest touched elements."""
    end = min(total, pos + _TRIGGER_SIZE)
    best = None
    if 0 <= pos < end:
        for tile in range(align, _ceil_to(end, align) + 1, align):
            blk0 = pos // tile
            n = pl.cdiv(end, tile) - blk0
            if (blk0 + n) * tile > total:
                continue                      # block would run past the array
            touched = n * tile
            multi_penalty = 1 if (prefer_multi and n < 2) else 0
            key = (multi_penalty, n, touched)
            if best is None or key < best[0]:
                best = (key, (tile, blk0, n))
    if best is None:                          # fallback: single full-axis block
        return total, 0, 1
    return best[1]


def simple_trigger_forward(x, mask_param, trigger_param, offset=(0.0, 0.0)):
    """Pallas TPU forward of SimpleTrigger.

    x: (N, C, H, W) float32.  mask_param: (1, 80, 80).  trigger_param: (C, 80, 80).
    offset: concrete (host-side) pair of floats, mirroring the PyTorch
    `int(W * self.offset[0])` trace-time indexing (pass it as a static arg
    under jit).  For zero-copy output aliasing, donate x (donate_argnums=0).
    """
    N, C, H, W = x.shape
    pos0 = int(W * float(offset[0]))
    pos1 = int(H * float(offset[1]))

    # ---- trace-time parameter preprocessing (all EUP work hoisted) ----
    m = jnp.tanh(mask_param) / (2.0 + _EPSILON) + 0.5        # (1, 80, 80)
    p = jnp.tanh(trigger_param) / (2.0 + _EPSILON) + 0.5     # (C, 80, 80)

    # Row band (8-aligned) and column band (128-aligned) overlapping the
    # trigger window.  Prefer one big row block; split only when N == 1 so
    # v7x's two TensorCores both get parallel work.
    row_tile, row_blk0, n_row_blocks = _pick_window(pos1, H, 8, prefer_multi=(N == 1))
    col_tile, col_blk0, n_col_blocks = _pick_window(pos0, W, 128, prefer_multi=False)
    row_lo, col_lo = row_blk0 * row_tile, col_blk0 * col_tile
    band_rows = n_row_blocks * row_tile
    band_cols = n_col_blocks * col_tile

    # F.pad(t, ...) restricted to the touched band.  Outside the 80x80 window
    # the padded mask is 0, so a = 1-mask pads with 1.0 and b = mask*pattern
    # pads with 0.0, reproducing out == x there.  Negative high padding
    # truncates exactly like F.pad.  Band is padded to a full tile multiple so
    # every block read is in-bounds.
    def pad_to_band(t, fill):
        cfg = ((0, 0, 0),
               (pos1 - row_lo, row_lo + band_rows - pos1 - _TRIGGER_SIZE, 0),
               (pos0 - col_lo, col_lo + band_cols - pos0 - _TRIGGER_SIZE, 0))
        return lax.pad(t.astype(jnp.float32), jnp.float32(fill), cfg)

    # Single stacked parameter stream: plane 0 = a, planes 1..C = b.
    ab = jnp.concatenate([pad_to_band(1.0 - m, 1.0),
                          pad_to_band(m * p, 0.0)], axis=0)   # (C+1, band_rows, band_cols)

    touched = N * C * band_rows * band_cols
    cost = pl.CostEstimate(flops=2 * touched, transcendentals=0,
                           bytes_accessed=4 * (2 * touched + (C + 1) * band_rows * band_cols))

    # Double-buffer budget (x in + out + ab); only raise the scoped-VMEM limit
    # when a very wide image pushes past the ~32 MiB default (keep well under
    # v7x's 64 MiB physical VMEM).
    buf_bytes = 4 * row_tile * col_tile * (2 * C + 2 * C + 2 * (C + 1))
    vmem_limit = int(min(56 * 2 ** 20, max(32 * 2 ** 20, 2 * buf_bytes)))

    return pl.pallas_call(
        _blend_kernel,
        out_shape=jax.ShapeDtypeStruct((N, C, H, W), x.dtype),
        grid_spec=pltpu.PrefetchScalarGridSpec(
            num_scalar_prefetch=0,
            # Batch innermost: consecutive steps keep the same ab block index,
            # so the grid-invariant parameters are fetched once per band block.
            grid=(n_row_blocks, n_col_blocks, N),
            in_specs=[
                pl.BlockSpec((pl.Squeezed(), C, row_tile, col_tile),
                             lambda r, c, n: (n, 0, row_blk0 + r, col_blk0 + c)),
                pl.BlockSpec((C + 1, row_tile, col_tile),
                             lambda r, c, n: (0, r, c)),
            ],
            out_specs=pl.BlockSpec((pl.Squeezed(), C, row_tile, col_tile),
                                   lambda r, c, n: (n, 0, row_blk0 + r, col_blk0 + c)),
        ),
        # Pixels outside the band are never visited; aliasing the output onto
        # x leaves them bit-identical in HBM (zero-copy when x is donated).
        input_output_aliases={0: 0},
        compiler_params=pltpu.CompilerParams(
            dimension_semantics=("parallel", "parallel", "parallel"),
            vmem_limit_bytes=vmem_limit),
        cost_estimate=cost,
    )(x, ab)


def _reference_forward(x, mask_param, trigger_param, offset):
    """Pure-JAX reference matching the PyTorch module, for a sanity check."""
    N, C, H, W = x.shape
    pos0 = int(W * float(offset[0]))
    pos1 = int(H * float(offset[1]))
    m = jnp.tanh(mask_param) / (2.0 + _EPSILON) + 0.5
    p = jnp.tanh(trigger_param) / (2.0 + _EPSILON) + 0.5
    cfg = ((0, 0, 0),
           (pos1, H - pos1 - _TRIGGER_SIZE, 0),
           (pos0, W - pos0 - _TRIGGER_SIZE, 0))
    m = lax.pad(m, jnp.float32(0.0), cfg)
    p = lax.pad(p, jnp.float32(0.0), cfg)
    return (1.0 - m)[None] * x + (m * p)[None]


if __name__ == "__main__":
    key = jax.random.PRNGKey(0)
    k_mask, k_trig, k_x = jax.random.split(key, 3)

    # Module params: forward hard-codes an 80x80 trigger; offset starts at 0.
    w = h = _TRIGGER_SIZE
    mask_param = (jax.random.uniform(k_mask, (1, w, h), jnp.float32,
                                     minval=-0.1, maxval=0.1) + 0.2)
    trigger_param = jax.random.uniform(k_trig, (3, w, h), jnp.float32,
                                       minval=-0.1, maxval=0.1)
    offset = (0.0, 0.0)   # nn.Parameter(torch.Tensor(2).fill_(0))

    # Input: small batch, C=3, spatial 128 (>= 80 so padding is non-negative).
    N, C, H, W = 2, 3, 128, 128
    x = jax.random.normal(k_x, (N, C, H, W), jnp.float32)

    # Reference first: x is donated to the kernel call below.
    ref = np.asarray(_reference_forward(x, mask_param, trigger_param, offset))

    # Donate x so the aliased output reuses its buffer (no defensive copy).
    fwd = jax.jit(simple_trigger_forward, static_argnums=(3,), donate_argnums=(0,))
    out = jax.block_until_ready(fwd(x, mask_param, trigger_param, offset))

    np.testing.assert_allclose(np.asarray(out), ref, rtol=1e-5, atol=1e-5)

    print("KERNEL_OK")
</pallas_src>

<mosaic_0001>
module attributes {stable_mosaic.version = 11 : i64} {
  func.func @_blend_kernel(%arg0: i32, %arg1: i32, %arg2: i32, %arg3: memref<1x3x80x128xf32, #tpu.memory_space<vmem>>, %arg4: memref<4x80x128xf32, #tpu.memory_space<vmem>>, %arg5: memref<1x3x80x128xf32, #tpu.memory_space<vmem>>) attributes {dimension_semantics = [#tpu.dimension_semantics<parallel>, #tpu.dimension_semantics<parallel>, #tpu.dimension_semantics<parallel>], iteration_bounds = array<i64: 1, 1, 2>, scalar_prefetch = 0 : i64, scratch_operands = 0 : i64, tpu.core_type = #tpu.core_type<tc>, window_params = [{transform_indices = @transform_0, window_bounds = array<i64: 1, 3, 80, 128>}, {transform_indices = @transform_1, window_bounds = array<i64: 4, 80, 128>}, {transform_indices = @transform_2, window_bounds = array<i64: 1, 3, 80, 128>}]} {
    %c0 = arith.constant 0 : index
    %c0_0 = arith.constant 0 : index
    %c0_1 = arith.constant 0 : index
    %0 = vector.load %arg4[%c0, %c0_0, %c0_1] : memref<4x80x128xf32, #tpu.memory_space<vmem>>, vector<1x80x128xf32>
    %c1 = arith.constant 1 : index
    %c0_2 = arith.constant 0 : index
    %c0_3 = arith.constant 0 : index
    %1 = vector.load %arg4[%c1, %c0_2, %c0_3] : memref<4x80x128xf32, #tpu.memory_space<vmem>>, vector<3x80x128xf32>
    %c0_4 = arith.constant 0 : index
    %c0_5 = arith.constant 0 : index
    %c0_6 = arith.constant 0 : index
    %c0_7 = arith.constant 0 : index
    %2 = vector.load %arg3[%c0_4, %c0_5, %c0_6, %c0_7] : memref<1x3x80x128xf32, #tpu.memory_space<vmem>>, vector<1x3x80x128xf32>
    %3 = vector.shape_cast %2 : vector<1x3x80x128xf32> to vector<3x80x128xf32>
    %4 = vector.broadcast %0 : vector<1x80x128xf32> to vector<3x80x128xf32>
    %5 = arith.mulf %4, %3 : vector<3x80x128xf32>
    %6 = arith.addf %5, %1 : vector<3x80x128xf32>
    %c0_8 = arith.constant 0 : index
    %c0_9 = arith.constant 0 : index
    %c0_10 = arith.constant 0 : index
    %c0_11 = arith.constant 0 : index
    %7 = vector.load %arg5[%c0_8, %c0_9, %c0_10, %c0_11] : memref<1x3x80x128xf32, #tpu.memory_space<vmem>>, vector<1x3x80x128xf32>
    %8 = vector.shape_cast %7 : vector<1x3x80x128xf32> to vector<3x80x128xf32>
    %9 = vector.shape_cast %6 : vector<3x80x128xf32> to vector<1x3x80x128xf32>
    tpu.vector_store %arg5[%c0_8, %c0_9, %c0_10, %c0_11], %9 {strides = array<i32>} : memref<1x3x80x128xf32, #tpu.memory_space<vmem>>, vector<1x3x80x128xf32>,
    return
  }
  func.func @transform_0(%arg0: i32, %arg1: i32, %arg2: i32) -> (i32, i32, i32, i32) {
    %c0_i32 = arith.constant 0 : i32
    %0 = arith.addi %c0_i32, %arg0 : i32
    %c0_i32_0 = arith.constant 0 : i32
    %1 = arith.addi %c0_i32_0, %arg1 : i32
    %c0_i32_1 = arith.constant 0 : i32
    %c0_i32_2 = arith.constant 0 : i32
    return %arg2, %c0_i32_1, %0, %1 : i32, i32, i32, i32
  }
  func.func @transform_1(%arg0: i32, %arg1: i32, %arg2: i32) -> (i32, i32, i32) {
    %c0_i32 = arith.constant 0 : i32
    %c0_i32_0 = arith.constant 0 : i32
    return %c0_i32, %arg0, %arg1 : i32, i32, i32
  }
  func.func @transform_2(%arg0: i32, %arg1: i32, %arg2: i32) -> (i32, i32, i32, i32) {
    %c0_i32 = arith.constant 0 : i32
    %0 = arith.addi %c0_i32, %arg0 : i32
    %c0_i32_0 = arith.constant 0 : i32
    %1 = arith.addi %c0_i32_0, %arg1 : i32
    %c0_i32_1 = arith.constant 0 : i32
    %c0_i32_2 = arith.constant 0 : i32
    return %arg2, %c0_i32_1, %0, %1 : i32, i32, i32, i32
  }
}

</mosaic_0001>

<llo_original>
// kernel: simple_trigger_forward.1
$region0: #{simple_trigger_forward.1}
  #allocation0 [shape = 'u32[]', space=smem, size = 0x4, offset = 0x4, fixed_abs, tag = 'smem constant byte address 0x4 - core index']
  #allocation1 [shape = 'u32[144,128]{1,0:T(1,128)}', space=vmem, size = 0x12000, scoped, tag = 'internal scratch']
  #allocation6 [shape = 's32[]', space=sflag, size = 0x4, offset = 0, fixed_abs, tag = 'sflag constant byte address 0x0 - dummy sync flag']
  #allocation8 [shape = 's32[]', space=sflag, size = 0x4, offset = 0, fixed_abs, tag = 'sflag constant byte address 0x0 - dummy sync flag']
  %s0 = inlined_call_operand.hbm [shape: f32[2,3,128,128], index: 0, kind: input, shape index: {}, may-alias: {0,2}]
  %s1 = inlined_call_operand.vmem [shape: f32[4,80,128], index: 1, kind: input, shape index: {}]
  %s2 = inlined_call_operand.hbm [shape: f32[2,3,128,128], index: 2, kind: output, shape index: {}, may-alias: {0,2}]
  %s3 = sld [smem:[#allocation0]]
  $region45: #{simple_trigger_forward.1} parent=0
    _
  %s5 = ssub.s32 1, %s3
  %s6 = scalar_select 0, %s5, %s3
  $region1: #{simple_trigger_forward.1} parent=0
    #allocation2 [shape = 'u8[245760]{0}', space=vmem, size = 0x3c000, scoped, tag = 'input window, operand 0']
    #allocation3 [shape = 's32[2]{0}', space=sflag, size = 0x8, scoped, tag = 'scoped memory for simple_trigger_forward.1']
    #allocation4 [shape = 's32[2]{0}', space=sflag, size = 0x8, scoped, tag = 'scoped memory for simple_trigger_forward.1']
    #allocation5 [shape = 'u8[245760]{0}', space=vmem, size = 0x3c000, scoped, tag = 'output window, operand 0']
    %7 = vsyncpa [#allocation3], 0
    %s8 = scalar_lea.sflag [#allocation3], 1
    %9 = vsyncpa %s8, 0
    %10 = vsyncpa [#allocation4], 0
    %s11 = scalar_lea.sflag [#allocation4], 1
    %12 = vsyncpa %s11, 0
    loop: start=0, step=1, limit=4
    $region2: #{simple_trigger_forward.1} parent=1 // loop_pre_header
      _
    $region3: #{simple_trigger_forward.1} parent=1 // loop_header
      %s14 = sphi 0, %s18
      %p15 = scmp.ge.s32.totalorder %s14, 4
      %s21 = sphi 0, %s40
      %s22 = sphi 0, %s36
      %s23 = sphi 0, %s32
      %s24 = sphi 0, %s21
      %s25 = sphi 0, %s22
      %s26 = sphi 0, %s23
      %s27 = sphi 0, %s24
      %s28 = sphi 0, %s25
      %s29 = sphi 0, %s26
      %s47 = sphi 0, %s49
      %s50 = sphi 0, %s47
      %s51 = sphi 0, %s50
      %s67 = sphi 0, %s51
      %s75 = sphi 0, %s77
      %s78 = sphi 0, %s75
      %s79 = sphi 0, %s78
      %s95 = sphi 0, %s79
      %s105 = sphi 0, %s107
      %s108 = sphi 0, %s105
      %s109 = sphi 0, %s108
      %s125 = sphi 0, %s109
    $region4: #{simple_trigger_forward.1} parent=1 // loop_header_branch
      %17 = sbr.rel (%p15) target = $region8
    $region5: #{simple_trigger_forward.1} parent=1 // loop_body
      %s19 = ssub.s32 %s14, 1
      %s20 = ssub.s32 %s14, 2
      %s30 = sadd.s32 1, %s23
      %p31 = scmp.ge.s32.totalorder %s30, 2
      %s32 = scalar_select %p31, 0, %s30
      %s33 = sadd.s32 1, %s22
      %s34 = scalar_select %p31, %s33, %s22
      %p35 = scmp.ge.s32.totalorder %s34, 1
      %s36 = scalar_select %p35, 0, %s34
      %s37 = sadd.s32 1, %s21
      %s38 = scalar_select %p35, %s37, %s21
      %p39 = scmp.ge.s32.totalorder %s38, 1
      %s40 = scalar_select %p39, 0, %s38
      %s41 = ssub.s32 %s23, %s32
      %s42 = ssub.s32 %s21, %s40
      %s43 = sor.u32 %s41, %s42
      %s44 = ssub.s32 %s22, %s36
      %s45 = sor.u32 %s43, %s44
      %p46 = scmp.eq.s32.totalorder %s45, 0
      %s48 = sadd.s32 %s47, 1
      %s49 = scalar_select %p46, %s47, %s48
      %p52 = pneg %p46
      %p53 = scmp.eq.s32.totalorder %s14, 1
      %p54 = por %p52, %p53
      %p55 = scmp.ne.s32.totalorder %s47, %s50
      %p56 = scmp.eq.s32.totalorder %s14, 0
      %p57 = por %p55, %p56
      %p58 = scmp.ne.s32.totalorder %s47, %s50
      %p59 = scmp.eq.s32.totalorder %s19, 1
      %p60 = por %p58, %p59
      %p61 = scmp.ne.s32.totalorder %s50, %s51
      %p62 = scmp.eq.s32.totalorder %s19, 0
      %p63 = por %p61, %p62
      %p64 = scmp.ne.s32.totalorder %s50, %s51
      %p65 = scmp.eq.s32.totalorder %s20, 1
      %p66 = por %p64, %p65
      %p68 = scmp.ne.s32.totalorder %s51, %s67
      %p69 = scmp.eq.s32.totalorder %s20, 0
      %p70 = por %p68, %p69
      %s71 = ssub.s32 %s21, %s40
      %s72 = ssub.s32 %s22, %s36
      %s73 = sor.u32 %s71, %s72
      %p74 = scmp.eq.s32.totalorder %s73, 0
      %s76 = sadd.s32 %s75, 1
      %s77 = scalar_select %p74, %s75, %s76
      %p80 = pneg %p74
      %p81 = scmp.eq.s32.totalorder %s14, 1
      %p82 = por %p80, %p81
      %p83 = scmp.ne.s32.totalorder %s75, %s78
      %p84 = scmp.eq.s32.totalorder %s14, 0
      %p85 = por %p83, %p84
      %p86 = scmp.ne.s32.totalorder %s75, %s78
      %p87 = scmp.eq.s32.totalorder %s19, 1
      %p88 = por %p86, %p87
      %p89 = scmp.ne.s32.totalorder %s78, %s79
      %p90 = scmp.eq.s32.totalorder %s19, 0
      %p91 = por %p89, %p90
      %p92 = scmp.ne.s32.totalorder %s78, %s79
      %p93 = scmp.eq.s32.totalorder %s20, 1
      %p94 = por %p92, %p93
      %p96 = scmp.ne.s32.totalorder %s79, %s95
      %p97 = scmp.eq.s32.totalorder %s20, 0
      %p98 = por %p96, %p97
      %s99 = ssub.s32 %s23, %s32
      %s100 = ssub.s32 %s21, %s40
      %s101 = sor.u32 %s99, %s100
      %s102 = ssub.s32 %s22, %s36
      %s103 = sor.u32 %s101, %s102
      %p104 = scmp.eq.s32.totalorder %s103, 0
      %s106 = sadd.s32 %s105, 1
      %s107 = scalar_select %p104, %s105, %s106
      %p110 = pneg %p104
      %p111 = scmp.eq.s32.totalorder %s14, 1
      %p112 = por %p110, %p111
      %p113 = scmp.ne.s32.totalorder %s105, %s108
      %p114 = scmp.eq.s32.totalorder %s14, 0
      %p115 = por %p113, %p114
      %p116 = scmp.ne.s32.totalorder %s105, %s108
      %p117 = scmp.eq.s32.totalorder %s19, 1
      %p118 = por %p116, %p117
      %p119 = scmp.ne.s32.totalorder %s108, %s109
      %p120 = scmp.eq.s32.totalorder %s19, 0
      %p121 = por %p119, %p120
      %p122 = scmp.ne.s32.totalorder %s108, %s109
      %p123 = scmp.eq.s32.totalorder %s20, 1
      %p124 = por %p122, %p123
      %p126 = scmp.ne.s32.totalorder %s109, %s125
      %p127 = scmp.eq.s32.totalorder %s20, 0
      %p128 = por %p126, %p127
      %p129 = scmp.le.s32.totalorder 1, %s14
      %p130 = scmp.lt.s32.totalorder %s14, 3
      %p131 = pnand %p129, %p130
      %p132 = pneg %p131
      // Predicated region
      $region9: #{simple_trigger_forward.1} parent=5 // pred_check
        _
      $region10: #{simple_trigger_forward.1} parent=5 // pred_check_branch
        %134 = sbr.rel (%p131) target = $region12
      $region11: #{simple_trigger_forward.1} parent=5 // pred_region
        %s135 = ssub.s32 %s14, 1
        // Predicated region
        $region13: #{simple_trigger_forward.1} parent=11 // pred_check
          %p136 = pneg %p91
        $region14: #{simple_trigger_forward.1} parent=11 // pred_check_branch
          %138 = sbr.rel (%p136) target = $region16
        $region15: #{simple_trigger_forward.1} parent=11 // pred_region
          %s139 = smul.u32 10, %s24
          %p140 = scmp.lt.s32.totalorder %s139, 9
          %s141 = scalar_select %p140, %s139, 9
          %p142 = scmp.lt.s32.totalorder %s25, 0
          %s143 = scalar_select %p142, %s25, 0
          %s144 = sadd.s32 %s143, %s141
          %s145 = smul.addr %s144, 8
          %s146 = scalar_lea.vmem %s1, %s145
          %s147 = smul.u32 10, %s24
        $region16: #{simple_trigger_forward.1} parent=11 // pred_fallthru
          _
      $region12: #{simple_trigger_forward.1} parent=5 // pred_fallthru
        _
      %p148 = scmp.lt.s32.totalorder %s14, 2
      // Predicated region
      $region17: #{simple_trigger_forward.1} parent=5 // pred_check
        %p149 = pneg %p148
      $region18: #{simple_trigger_forward.1} parent=5 // pred_check_branch
        %151 = sbr.rel (%p149) target = $region20
      $region19: #{simple_trigger_forward.1} parent=5 // pred_region
        // Predicated region
        $region21: #{simple_trigger_forward.1} parent=19 // pred_check
          %p152 = pneg %p57
        $region22: #{simple_trigger_forward.1} parent=19 // pred_check_branch
          %154 = sbr.rel (%p152) target = $region24
        $region23: #{simple_trigger_forward.1} parent=19 // pred_region
          #allocation7 [shape = 'u32[6]{0}', space=smem, size = 0x18, scoped, tag = 'DMA stride descriptor']
          %s155 = sand.u32 %s47, 1
          %s156 = scalar_lea.sflag [#allocation3], %s155
          %s157 = sand.u32 %s47, 1
          %s158 = smul.addr %s157, 240
          %s159 = scalar_lea.vmem [#allocation2], %s158
          %s160 = smul.u32 10, %s21
          %s161 = ssub.s32 16, %s160
          %p162 = scmp.lt.s32.totalorder %s161, 10
          %s163 = scalar_select %p162, %s161, 10
          %s164 = smul.u32 384, %s163
          %s166 = ssub.s32 3840, %s164
          %167 = vsyncadd %s156, %s166
          %p168 = scmp.ne.s32.totalorder 0, %s164
          %s169 = sadd.s32 %s22, %s160
          %s170 = smul.addr %s23, 48
          %s171 = sadd.s32 %s169, %s170
          %s172 = smul.addr %s171, 128
          %s173 = scalar_lea.hbm %s0, %s172
          %s174 = smul.u32 8, %s163
          %s175 = smul.u32 %s174, 3
          %s177 = sshll.u32 1, 14
          %s178 = sxor.u32 4294967295, %s177
          %s180 = sld [smem:[#allocation0]]
          %s181 = sadd.s32 2, %s180
          %s183 = sshll.u32 7, 26
          %s184 = sxor.u32 4294967295, %s183
          %s185 = sand.u32 0, %s184
          %s186 = sshll.u32 %s181, 26
          %s187 = sor.u32 %s185, %s186
          %s188 = sshll.u32 %s159, 4
          %s189 = int_to_ptr.vmem [resolvable:$true] %s188
          %s190 = sshll.u32 %s175, 4
          %195 = sst [smem:[#allocation7]] 2048
          %s196 = scalar_lea.smem [#allocation7], 1
          %197 = sst [smem:[%s196]] 1280
          %s198 = scalar_lea.smem [#allocation7], 2
          %199 = sst [smem:[%s198]] %s163
          %s200 = scalar_lea.smem [#allocation7], 3
          %201 = sst [smem:[%s200]] 128
          %s202 = scalar_lea.smem [#allocation7], 4
          %203 = sst [smem:[%s202]] 128
          %s204 = scalar_lea.smem [#allocation7], 5
          %205 = sst [smem:[%s204]] 8
          %207 = dma.general (%p168), %s173, %s190, %s189, %s156, [#allocation6], [#allocation7], %s187, 0
        $region24: #{simple_trigger_forward.1} parent=19 // pred_fallthru
          _
      $region20: #{simple_trigger_forward.1} parent=5 // pred_fallthru
        _
      %p208 = scmp.le.s32.totalorder 1, %s14
      %p209 = scmp.lt.s32.totalorder %s14, 3
      %p210 = pnand %p208, %p209
      %p211 = pneg %p210
      // Predicated region
      $region25: #{simple_trigger_forward.1} parent=5 // pred_check
        _
      $region26: #{simple_trigger_forward.1} parent=5 // pred_check_branch
        %213 = sbr.rel (%p210) target = $region28
      $region27: #{simple_trigger_forward.1} parent=5 // pred_region
        %s214 = ssub.s32 %s14, 1
        %s215 = sand.u32 %s50, 1
        %s216 = scalar_lea.sflag [#allocation3], %s215
        %s217 = sand.u32 %s50, 1
        %s218 = smul.addr %s217, 240
        %s219 = scalar_lea.vmem [#allocation2], %s218
        // Predicated region
        $region29: #{simple_trigger_forward.1} parent=27 // pred_check
          %p220 = pneg %p63
        $region30: #{simple_trigger_forward.1} parent=27 // pred_check_branch
          %222 = sbr.rel (%p220) target = $region32
        $region31: #{simple_trigger_forward.1} parent=27 // pred_region
          %223 = dma.done %s216, 3840
        $region32: #{simple_trigger_forward.1} parent=27 // pred_fallthru
          _
        %s224 = sand.u32 %s50, 1
        %s225 = scalar_lea.sflag [#allocation3], %s224
        %s226 = sand.u32 %s50, 1
        %s227 = smul.addr %s226, 240
        %s228 = scalar_lea.vmem [#allocation2], %s227
        %p229 = pneg %p63
        %p230 = pneg %p60
        %s231 = smul.u32 10, %s24
        %p232 = scmp.lt.s32.totalorder %s231, 9
        %s233 = scalar_select %p232, %s231, 9
        %p234 = scmp.lt.s32.totalorder %s25, 0
        %s235 = scalar_select %p234, %s25, 0
        %s236 = sadd.s32 %s235, %s233
        %s237 = smul.addr %s236, 8
        %s238 = scalar_lea.vmem %s1, %s237
        %p239 = pneg %p91
        %p240 = pneg %p88
        %p241 = pneg %p121
        %p242 = pneg %p118
        %s243 = sand.u32 %s108, 1
        %s244 = scalar_lea.sflag [#allocation4], %s243
        %s245 = sand.u32 %s108, 1
        %s246 = smul.addr %s245, 240
        %s247 = scalar_lea.vmem [#allocation5], %s246
        %s248 = smul.u32 10, %s24
        %s249 = ssub.s32 16, %s248
        %p250 = scmp.lt.s32.totalorder %s249, 10
        %s251 = scalar_select %p250, %s249, 10
        %s252 = smul.u32 384, %s251
        %s253 = smul.u32 10, %s24
        %p254 = scmp.lt.s32.totalorder %s253, 9
        %s255 = scalar_select %p254, %s253, 9
        %p256 = scmp.lt.s32.totalorder %s25, 0
        %s257 = scalar_select %p256, %s25, 0
        %s258 = sadd.s32 %s257, %s255
        %s259 = smul.addr %s258, 8
        %s260 = scalar_lea.vmem %s1, %s259
        %s261 = smul.u32 10, %s24
        %s262 = smul.u32 10, %s24
        %s263 = ssub.s32 16, %s262
        %p264 = scmp.lt.s32.totalorder %s263, 10
        %s265 = scalar_select %p264, %s263, 10
        %s266 = smul.u32 384, %s265
        %v267 = vld [vmem:[%s260] sm:$0xff]
        %v268 = vld [vmem:[%s260 + $0x8] sm:$0xff]
        %v269 = vld [vmem:[%s260 + $0x10] sm:$0xff]
        %v270 = vld [vmem:[%s260 + $0x18] sm:$0xff]
        %v271 = vld [vmem:[%s260 + $0x20] sm:$0xff]
        %v272 = vld [vmem:[%s260 + $0x28] sm:$0xff]
        %v273 = vld [vmem:[%s260 + $0x30] sm:$0xff]
        %v274 = vld [vmem:[%s260 + $0x38] sm:$0xff]
        %v275 = vld [vmem:[%s260 + $0x40] sm:$0xff]
        %v276 = vld [vmem:[%s260 + $0x48] sm:$0xff]
        %s277 = scalar_lea.vmem %s260, 80
        %v278 = vld [vmem:[%s277] sm:$0xff]
        %v279 = vld [vmem:[%s277 + $0x8] sm:$0xff]
        %v280 = vld [vmem:[%s277 + $0x10] sm:$0xff]
        %v281 = vld [vmem:[%s277 + $0x18] sm:$0xff]
        %v282 = vld [vmem:[%s277 + $0x20] sm:$0xff]
        %v283 = vld [vmem:[%s277 + $0x28] sm:$0xff]
        %v284 = vld [vmem:[%s277 + $0x30] sm:$0xff]
        %v285 = vld [vmem:[%s277 + $0x38] sm:$0xff]
        %v286 = vld [vmem:[%s277 + $0x40] sm:$0xff]
        %v287 = vld [vmem:[%s277 + $0x48] sm:$0xff]
        %v288 = vld [vmem:[%s277 + $0x50] sm:$0xff]
        %v289 = vld [vmem:[%s277 + $0x58] sm:$0xff]
        %v290 = vld [vmem:[%s277 + $0x60] sm:$0xff]
        %v291 = vld [vmem:[%s277 + $0x68] sm:$0xff]
        %v292 = vld [vmem:[%s277 + $0x70] sm:$0xff]
        %v293 = vld [vmem:[%s277 + $0x78] sm:$0xff]
        %v294 = vld [vmem:[%s277 + $0x80] sm:$0xff]
        %v295 = vld [vmem:[%s277 + $0x88] sm:$0xff]
        %v296 = vld [vmem:[%s277 + $0x90] sm:$0xff]
        %v297 = vld [vmem:[%s277 + $0x98] sm:$0xff]
        %v298 = vld [vmem:[%s277 + $0xa0] sm:$0xff]
        %v299 = vld [vmem:[%s277 + $0xa8] sm:$0xff]
        %v300 = vld [vmem:[%s277 + $0xb0] sm:$0xff]
        %v301 = vld [vmem:[%s277 + $0xb8] sm:$0xff]
        %v302 = vld [vmem:[%s277 + $0xc0] sm:$0xff]
        %v303 = vld [vmem:[%s277 + $0xc8] sm:$0xff]
        %v304 = vld [vmem:[%s277 + $0xd0] sm:$0xff]
        %v305 = vld [vmem:[%s277 + $0xd8] sm:$0xff]
        %v306 = vld [vmem:[%s277 + $0xe0] sm:$0xff]
        %v307 = vld [vmem:[%s277 + $0xe8] sm:$0xff]
        %v308 = vld [vmem:[%s219] sm:$0xff]
        %v309 = vld [vmem:[%s219 + $0x8] sm:$0xff]
        %v310 = vld [vmem:[%s219 + $0x10] sm:$0xff]
        %v311 = vld [vmem:[%s219 + $0x18] sm:$0xff]
        %v312 = vld [vmem:[%s219 + $0x20] sm:$0xff]
        %v313 = vld [vmem:[%s219 + $0x28] sm:$0xff]
        %v314 = vld [vmem:[%s219 + $0x30] sm:$0xff]
        %v315 = vld [vmem:[%s219 + $0x38] sm:$0xff]
        %v316 = vld [vmem:[%s219 + $0x40] sm:$0xff]
        %v317 = vld [vmem:[%s219 + $0x48] sm:$0xff]
        %v318 = vld [vmem:[%s219 + $0x50] sm:$0xff]
        %v319 = vld [vmem:[%s219 + $0x58] sm:$0xff]
        %v320 = vld [vmem:[%s219 + $0x60] sm:$0xff]
        %v321 = vld [vmem:[%s219 + $0x68] sm:$0xff]
        %v322 = vld [vmem:[%s219 + $0x70] sm:$0xff]
        %v323 = vld [vmem:[%s219 + $0x78] sm:$0xff]
        %v324 = vld [vmem:[%s219 + $0x80] sm:$0xff]
        %v325 = vld [vmem:[%s219 + $0x88] sm:$0xff]
        %v326 = vld [vmem:[%s219 + $0x90] sm:$0xff]
        %v327 = vld [vmem:[%s219 + $0x98] sm:$0xff]
        %v328 = vld [vmem:[%s219 + $0xa0] sm:$0xff]
        %v329 = vld [vmem:[%s219 + $0xa8] sm:$0xff]
        %v330 = vld [vmem:[%s219 + $0xb0] sm:$0xff]
        %v331 = vld [vmem:[%s219 + $0xb8] sm:$0xff]
        %v332 = vld [vmem:[%s219 + $0xc0] sm:$0xff]
        %v333 = vld [vmem:[%s219 + $0xc8] sm:$0xff]
        %v334 = vld [vmem:[%s219 + $0xd0] sm:$0xff]
        %v335 = vld [vmem:[%s219 + $0xd8] sm:$0xff]
        %v336 = vld [vmem:[%s219 + $0xe0] sm:$0xff]
        %v337 = vld [vmem:[%s219 + $0xe8] sm:$0xff]
        %v338 = vmul.f32 %v267, %v308
        %v339 = vmul.f32 %v268, %v309
        %v340 = vmul.f32 %v269, %v310
        %v341 = vmul.f32 %v270, %v311
        %v342 = vmul.f32 %v271, %v312
        %v343 = vmul.f32 %v272, %v313
        %v344 = vmul.f32 %v273, %v314
        %v345 = vmul.f32 %v274, %v315
        %v346 = vmul.f32 %v275, %v316
        %v347 = vmul.f32 %v276, %v317
        %v348 = vmul.f32 %v267, %v318
        %v349 = vmul.f32 %v268, %v319
        %v350 = vmul.f32 %v269, %v320
        %v351 = vmul.f32 %v270, %v321
        %v352 = vmul.f32 %v271, %v322
        %v353 = vmul.f32 %v272, %v323
        %v354 = vmul.f32 %v273, %v324
        %v355 = vmul.f32 %v274, %v325
        %v356 = vmul.f32 %v275, %v326
        %v357 = vmul.f32 %v276, %v327
        %v358 = vmul.f32 %v267, %v328
        %v359 = vmul.f32 %v268, %v329
        %v360 = vmul.f32 %v269, %v330
        %v361 = vmul.f32 %v270, %v331
        %v362 = vmul.f32 %v271, %v332
        %v363 = vmul.f32 %v272, %v333
        %v364 = vmul.f32 %v273, %v334
        %v365 = vmul.f32 %v274, %v335
        %v366 = vmul.f32 %v275, %v336
        %v367 = vmul.f32 %v276, %v337
        %v368 = vadd.f32 %v338, %v278
        %v369 = vadd.f32 %v339, %v279
        %v370 = vadd.f32 %v340, %v280
        %v371 = vadd.f32 %v341, %v281
        %v372 = vadd.f32 %v342, %v282
        %v373 = vadd.f32 %v343, %v283
        %v374 = vadd.f32 %v344, %v284
        %v375 = vadd.f32 %v345, %v285
        %v376 = vadd.f32 %v346, %v286
        %v377 = vadd.f32 %v347, %v287
        %v378 = vadd.f32 %v348, %v288
        %v379 = vadd.f32 %v349, %v289
        %v380 = vadd.f32 %v350, %v290
        %v381 = vadd.f32 %v351, %v291
        %v382 = vadd.f32 %v352, %v292
        %v383 = vadd.f32 %v353, %v293
        %v384 = vadd.f32 %v354, %v294
        %v385 = vadd.f32 %v355, %v295
        %v386 = vadd.f32 %v356, %v296
        %v387 = vadd.f32 %v357, %v297
        %v388 = vadd.f32 %v358, %v298
        %v389 = vadd.f32 %v359, %v299
        %v390 = vadd.f32 %v360, %v300
        %v391 = vadd.f32 %v361, %v301
        %v392 = vadd.f32 %v362, %v302
        %v393 = vadd.f32 %v363, %v303
        %v394 = vadd.f32 %v364, %v304
        %v395 = vadd.f32 %v365, %v305
        %v396 = vadd.f32 %v366, %v306
        %v397 = vadd.f32 %v367, %v307
        %398 = vst [vmem:[%s247] sm:$0xff] %v368
        %399 = vst [vmem:[%s247 + $0x8] sm:$0xff] %v369
        %400 = vst [vmem:[%s247 + $0x10] sm:$0xff] %v370
        %401 = vst [vmem:[%s247 + $0x18] sm:$0xff] %v371
        %402 = vst [vmem:[%s247 + $0x20] sm:$0xff] %v372
        %403 = vst [vmem:[%s247 + $0x28] sm:$0xff] %v373
        %404 = vst [vmem:[%s247 + $0x30] sm:$0xff] %v374
        %405 = vst [vmem:[%s247 + $0x38] sm:$0xff] %v375
        %406 = vst [vmem:[%s247 + $0x40] sm:$0xff] %v376
        %407 = vst [vmem:[%s247 + $0x48] sm:$0xff] %v377
        %408 = vst [vmem:[%s247 + $0x50] sm:$0xff] %v378
        %409 = vst [vmem:[%s247 + $0x58] sm:$0xff] %v379
        %410 = vst [vmem:[%s247 + $0x60] sm:$0xff] %v380
        %411 = vst [vmem:[%s247 + $0x68] sm:$0xff] %v381
        %412 = vst [vmem:[%s247 + $0x70] sm:$0xff] %v382
        %413 = vst [vmem:[%s247 + $0x78] sm:$0xff] %v383
        %414 = vst [vmem:[%s247 + $0x80] sm:$0xff] %v384
        %415 = vst [vmem:[%s247 + $0x88] sm:$0xff] %v385
        %416 = vst [vmem:[%s247 + $0x90] sm:$0xff] %v386
        %417 = vst [vmem:[%s247 + $0x98] sm:$0xff] %v387
        %418 = vst [vmem:[%s247 + $0xa0] sm:$0xff] %v388
        %419 = vst [vmem:[%s247 + $0xa8] sm:$0xff] %v389
        %420 = vst [vmem:[%s247 + $0xb0] sm:$0xff] %v390
        %421 = vst [vmem:[%s247 + $0xb8] sm:$0xff] %v391
        %422 = vst [vmem:[%s247 + $0xc0] sm:$0xff] %v392
        %423 = vst [vmem:[%s247 + $0xc8] sm:$0xff] %v393
        %424 = vst [vmem:[%s247 + $0xd0] sm:$0xff] %v394
        %425 = vst [vmem:[%s247 + $0xd8] sm:$0xff] %v395
        %426 = vst [vmem:[%s247 + $0xe0] sm:$0xff] %v396
        %427 = vst [vmem:[%s247 + $0xe8] sm:$0xff] %v397
        %s428 = sand.u32 %s108, 1
        %s429 = scalar_lea.sflag [#allocation4], %s428
        %s430 = sand.u32 %s108, 1
        %s431 = smul.addr %s430, 240
        %s432 = scalar_lea.vmem [#allocation5], %s431
        // Predicated region
        $region33: #{simple_trigger_forward.1} parent=27 // pred_check
          %p433 = pneg %p118
        $region34: #{simple_trigger_forward.1} parent=27 // pred_check_branch
          %435 = sbr.rel (%p433) target = $region36
        $region35: #{simple_trigger_forward.1} parent=27 // pred_region
          #allocation9 [shape = 'u32[6]{0}', space=smem, size = 0x18, scoped, tag = 'DMA stride descriptor']
          %s436 = smul.u32 10, %s24
          %s437 = ssub.s32 16, %s436
          %p438 = scmp.lt.s32.totalorder %s437, 10
          %s439 = scalar_select %p438, %s437, 10
          %s440 = smul.u32 384, %s439
          %s442 = ssub.s32 3840, %s440
          %443 = vsyncadd %s429, %s442
          %p444 = scmp.ne.s32.totalorder 0, %s440
          %s445 = sadd.s32 %s25, %s436
          %s446 = smul.addr %s26, 48
          %s447 = sadd.s32 %s445, %s446
          %s448 = smul.addr %s447, 128
          %s449 = scalar_lea.hbm %s2, %s448
          %s450 = smul.u32 8, %s439
          %s451 = smul.u32 %s450, 3
          %s453 = sshll.u32 1, 14
          %s454 = sxor.u32 4294967295, %s453
          %s457 = sshll.u32 7, 18
          %s458 = sxor.u32 4294967295, %s457
          %s459 = sand.u32 0, %s458
          %s461 = sor.u32 %s459, 0
          %s463 = sshll.u32 3, 24
          %s464 = sxor.u32 4294967295, %s463
          %s465 = sand.u32 %s461, %s464
          %s467 = sor.u32 %s465, 0
          %s468 = sshll.u32 %s432, 4
          %s469 = int_to_ptr.vmem [resolvable:$true] %s468
          %s470 = sshll.u32 %s451, 4
          %475 = sst [smem:[#allocation9]] 1280
          %s476 = scalar_lea.smem [#allocation9], 1
          %477 = sst [smem:[%s476]] 2048
          %s478 = scalar_lea.smem [#allocation9], 2
          %479 = sst [smem:[%s478]] %s439
          %s480 = scalar_lea.smem [#allocation9], 3
          %481 = sst [smem:[%s480]] 128
          %s482 = scalar_lea.smem [#allocation9], 4
          %483 = sst [smem:[%s482]] 128
          %s484 = scalar_lea.smem [#allocation9], 5
          %485 = sst [smem:[%s484]] 8
          %487 = dma.general (%p444), %s469, %s470, %s449, %s429, [#allocation8], [#allocation9], %s467, 0
        $region36: #{simple_trigger_forward.1} parent=27 // pred_fallthru
          _
      $region28: #{simple_trigger_forward.1} parent=5 // pred_fallthru
        _
      %p488 = scmp.le.s32.totalorder 2, %s14
      // Predicated region
      $region37: #{simple_trigger_forward.1} parent=5 // pred_check
        %p489 = pneg %p488
      $region38: #{simple_trigger_forward.1} parent=5 // pred_check_branch
        %491 = sbr.rel (%p489) target = $region40
      $region39: #{simple_trigger_forward.1} parent=5 // pred_region
        %s492 = ssub.s32 %s14, 2
        // Predicated region
        $region41: #{simple_trigger_forward.1} parent=39 // pred_check
          %p493 = pneg %p124
        $region42: #{simple_trigger_forward.1} parent=39 // pred_check_branch
          %495 = sbr.rel (%p493) target = $region44
        $region43: #{simple_trigger_forward.1} parent=39 // pred_region
          %s496 = sand.u32 %s109, 1
          %s497 = scalar_lea.sflag [#allocation4], %s496
          %s498 = sand.u32 %s109, 1
          %s499 = smul.addr %s498, 240
          %s500 = scalar_lea.vmem [#allocation5], %s499
          %501 = dma.done %s497, 3840
        $region44: #{simple_trigger_forward.1} parent=39 // pred_fallthru
          _
      $region40: #{simple_trigger_forward.1} parent=5 // pred_fallthru
        _
    $region6: #{simple_trigger_forward.1} parent=1 // loop_footer
      %s18 = sadd.s32 1, %s14
    $region7: #{simple_trigger_forward.1} parent=1 // loop_footer_branch
      %13 = sbr.rel target = $region3
    $region8: #{simple_trigger_forward.1} parent=1 // loop_exit
      _
    %502 = vsyncpa [#allocation3], 1
    %s503 = scalar_lea.sflag [#allocation3], 1
    %504 = vsyncpa %s503, 1
    %505 = vsyncpa [#allocation4], 1
    %s506 = scalar_lea.sflag [#allocation4], 1
    %507 = vsyncpa %s506, 1

</llo_original>
